<compile_context>
chip_gen: v7x
topology: tpu7x:2x2x1
jax: 0.10.0
libtpu: 0.0.40
codegen_flags: <defaults>
</compile_context>

<pallas_src>
import math
import functools

import jax
import jax.numpy as jnp
from jax.experimental import pallas as pl
from jax.experimental.pallas import tpu as pltpu


# ----------------------------------------------------------------------------
# Parameter / buffer setup (glue, plain JAX) -- mirrors nn.Module.__init__
# ----------------------------------------------------------------------------
def build_fixed_pe(max_len: int, d_model: int, scale_factor: float = 1.0,
                   dtype=jnp.float32):
    """Builds the (max_len, 1, d_model) sinusoidal positional-encoding buffer."""
    assert d_model % 2 == 0, "d_model must be even (same constraint as torch code)"
    position = jnp.arange(max_len, dtype=jnp.float32)[:, None]            # (L, 1)
    div_term = jnp.exp(jnp.arange(0, d_model, 2, dtype=jnp.float32)
                       * (-math.log(10000.0) / d_model))                  # (D/2,)
    angles = position * div_term                                          # (L, D/2)
    pe = jnp.zeros((max_len, d_model), jnp.float32)
    pe = pe.at[:, 0::2].set(jnp.sin(angles))
    pe = pe.at[:, 1::2].set(jnp.cos(angles))
    # torch: scale_factor * pe.unsqueeze(0).transpose(0, 1) -> (max_len, 1, d_model)
    return (scale_factor * pe[:, None, :]).astype(dtype)


# ----------------------------------------------------------------------------
# Kernels
# ----------------------------------------------------------------------------
def _pe_add_kernel(x_ref, pe_ref, o_ref):
    # eval mode / p == 0: out = x + pe (broadcast over batch). Explicit cast so
    # mixed-precision inputs never try to store a promoted dtype.
    o_ref[...] = (x_ref[...] + pe_ref[...]).astype(o_ref.dtype)


def _pe_add_dropout_kernel(x_ref, pe_ref, bits_ref, o_ref, *, threshold, scale):
    # training mode: inverted dropout applied to (x + pe).
    # bits are uniform int8 noise in [-128, 127]; keep iff bits >= threshold,
    # so P(keep) = (128 - threshold) / 256 ≈ 1 - p (p quantized to 1/256).
    y = x_ref[...] + pe_ref[...]
    keep = bits_ref[...].astype(jnp.int32) >= threshold
    o_ref[...] = jnp.where(keep, y * scale, 0.0).astype(o_ref.dtype)


# ----------------------------------------------------------------------------
# Tiling helper
# ----------------------------------------------------------------------------
def _choose_block_seq(S: int, bytes_per_row: int,
                      target_block_bytes: int = 4 << 20, min_grid: int = 4) -> int:
    """Largest divisor of S whose per-step footprint stays under
    `target_block_bytes`, preferring >= `min_grid` grid steps so the auto
    pipeline can double-buffer DMA-in / compute / DMA-out."""
    divisors = [d for d in range(1, S + 1) if S % d == 0]
    fitting = [d for d in divisors if d * bytes_per_row <= target_block_bytes] or [1]
    pipelined = [d for d in fitting if S // d >= min_grid]
    return max(pipelined) if pipelined else max(fitting)


# ----------------------------------------------------------------------------
# Wrapper (the "forward" of the module)
# ----------------------------------------------------------------------------
def fixed_positional_encoding(x, pe, *, dropout_p: float = 0.1,
                              training: bool = False, rng_key=None,
                              block_seq: int | None = None):
    """x: (S, B, D); pe: (max_len, 1, D). Returns (S, B, D) in x.dtype."""
    S, B, D = x.shape
    pe_slice = pe[:S].astype(x.dtype)                     # (S, 1, D), matched dtype
    itemsize = jnp.dtype(x.dtype).itemsize
    apply_dropout = training and dropout_p > 0.0

    # Bytes touched per sequence position per grid step (x in + out + pe + bits).
    # Bits are always included in the sizing so eval/train share the same tiling.
    bytes_per_row = B * D * (2 * itemsize + 1) + D * itemsize

    if block_seq is None:
        block_seq = _choose_block_seq(S, bytes_per_row)
    assert S % block_seq == 0, "block_seq must divide the sequence length"
    nblk = S // block_seq

    x_spec = pl.BlockSpec((block_seq, B, D), lambda i: (i, 0, 0))
    pe_spec = pl.BlockSpec((block_seq, 1, D), lambda i: (i, 0, 0))
    out_spec = pl.BlockSpec((block_seq, B, D), lambda i: (i, 0, 0))
    out_shape = jax.ShapeDtypeStruct((S, B, D), x.dtype)

    # Explicit VMEM budget: ~double-buffered block footprint with headroom,
    # clamped to stay well inside v7x's 64 MiB physical VMEM.
    footprint = 2 * block_seq * bytes_per_row
    vmem_limit = int(min(max(2 * footprint, 16 << 20), 48 << 20))
    cparams = pltpu.CompilerParams(
        dimension_semantics=("parallel",),
        vmem_limit_bytes=vmem_limit,
    )

    if not apply_dropout:
        return pl.pallas_call(
            _pe_add_kernel,
            out_shape=out_shape,
            grid=(nblk,),
            in_specs=[x_spec, pe_spec],
            out_specs=out_spec,
            compiler_params=cparams,
        )(x, pe_slice)

    # Training: per-element int8 noise generated in the wrapper (1 byte/elem of
    # extra HBM traffic), compared against an 8-bit threshold inside the kernel.
    if rng_key is None:
        rng_key = jax.random.PRNGKey(0)
    bits_u8 = jax.random.bits(rng_key, (S, B, D), dtype=jnp.uint8)
    bits_i8 = jax.lax.bitcast_convert_type(bits_u8, jnp.int8)     # uniform [-128,127]
    threshold = int(round(dropout_p * 256.0)) - 128               # keep iff bits >= t
    scale = 1.0 / (1.0 - dropout_p)
    bits_spec = pl.BlockSpec((block_seq, B, D), lambda i: (i, 0, 0))

    return pl.pallas_call(
        functools.partial(_pe_add_dropout_kernel, threshold=threshold, scale=scale),
        out_shape=out_shape,
        grid=(nblk,),
        in_specs=[x_spec, pe_spec, bits_spec],
        out_specs=out_spec,
        compiler_params=cparams,
    )(x, pe_slice, bits_i8)


# ----------------------------------------------------------------------------
# Demo / self-test
# ----------------------------------------------------------------------------
if __name__ == "__main__":
    S, B, D = 8, 2, 32           # [sequence length, batch size, embed dim]
    MAX_LEN = 16
    P_DROP = 0.1

    key = jax.random.PRNGKey(0)
    kx, kdrop = jax.random.split(key)
    x = jax.random.normal(kx, (S, B, D), dtype=jnp.float32)
    pe = build_fixed_pe(MAX_LEN, D, scale_factor=1.0)

    # --- eval mode (dropout == identity): exact check against reference -----
    out_eval = fixed_positional_encoding(x, pe, dropout_p=P_DROP, training=False)
    out_eval = jax.block_until_ready(out_eval)
    ref = x + pe[:S]             # broadcast over batch, same as torch
    assert out_eval.shape == (S, B, D)
    assert jnp.allclose(out_eval, ref, rtol=1e-6, atol=1e-6), "eval mismatch"

    # --- training mode: every element must be 0 or (x+pe)/(1-p) -------------
    out_train = fixed_positional_encoding(x, pe, dropout_p=P_DROP,
                                          training=True, rng_key=kdrop)
    out_train = jax.block_until_ready(out_train)
    scaled = ref / (1.0 - P_DROP)
    is_dropped = jnp.isclose(out_train, 0.0, atol=1e-6)
    is_kept = jnp.isclose(out_train, scaled, rtol=1e-5, atol=1e-5)
    assert bool(jnp.all(is_dropped | is_kept)), "dropout values malformed"
    assert out_train.dtype == x.dtype

    print("KERNEL_OK")
</pallas_src>

<mosaic_0001>
module attributes {stable_mosaic.version = 11 : i64} {
  func.func @_pe_add_kernel(%arg0: i32, %arg1: memref<2x2x32xf32, #tpu.memory_space<vmem>>, %arg2: memref<2x1x32xf32, #tpu.memory_space<vmem>>, %arg3: memref<2x2x32xf32, #tpu.memory_space<vmem>>) attributes {dimension_semantics = [#tpu.dimension_semantics<parallel>], iteration_bounds = array<i64: 4>, scalar_prefetch = 0 : i64, scratch_operands = 0 : i64, tpu.core_type = #tpu.core_type<tc>, window_params = [{transform_indices = @transform_0, window_bounds = array<i64: 2, 2, 32>}, {transform_indices = @transform_1, window_bounds = array<i64: 2, 1, 32>}, {transform_indices = @transform_2, window_bounds = array<i64: 2, 2, 32>}]} {
    %c0 = arith.constant 0 : index
    %c0_0 = arith.constant 0 : index
    %c0_1 = arith.constant 0 : index
    %0 = vector.load %arg1[%c0, %c0_0, %c0_1] : memref<2x2x32xf32, #tpu.memory_space<vmem>>, vector<2x2x32xf32>
    %c0_2 = arith.constant 0 : index
    %c0_3 = arith.constant 0 : index
    %c0_4 = arith.constant 0 : index
    %1 = vector.load %arg2[%c0_2, %c0_3, %c0_4] : memref<2x1x32xf32, #tpu.memory_space<vmem>>, vector<2x1x32xf32>
    %2 = vector.broadcast %1 : vector<2x1x32xf32> to vector<2x2x32xf32>
    %3 = arith.addf %0, %2 : vector<2x2x32xf32>
    %c0_5 = arith.constant 0 : index
    %c0_6 = arith.constant 0 : index
    %c0_7 = arith.constant 0 : index
    %4 = vector.load %arg3[%c0_5, %c0_6, %c0_7] : memref<2x2x32xf32, #tpu.memory_space<vmem>>, vector<2x2x32xf32>
    tpu.vector_store %arg3[%c0_5, %c0_6, %c0_7], %3 {strides = array<i32>} : memref<2x2x32xf32, #tpu.memory_space<vmem>>, vector<2x2x32xf32>,
    return
  }
  func.func @transform_0(%arg0: i32) -> (i32, i32, i32) {
    %c0_i32 = arith.constant 0 : i32
    %c0_i32_0 = arith.constant 0 : i32
    %c0_i32_1 = arith.constant 0 : i32
    return %arg0, %c0_i32, %c0_i32_0 : i32, i32, i32
  }
  func.func @transform_1(%arg0: i32) -> (i32, i32, i32) {
    %c0_i32 = arith.constant 0 : i32
    %c0_i32_0 = arith.constant 0 : i32
    %c0_i32_1 = arith.constant 0 : i32
    return %arg0, %c0_i32, %c0_i32_0 : i32, i32, i32
  }
  func.func @transform_2(%arg0: i32) -> (i32, i32, i32) {
    %c0_i32 = arith.constant 0 : i32
    %c0_i32_0 = arith.constant 0 : i32
    %c0_i32_1 = arith.constant 0 : i32
    return %arg0, %c0_i32, %c0_i32_0 : i32, i32, i32
  }
}

</mosaic_0001>

<llo_original>
// kernel: tpu_custom_call.1
$region0: #{tpu_custom_call.1}
  #allocation0 [shape = 'u32[]', space=smem, size = 0x4, offset = 0x4, fixed_abs, tag = 'smem constant byte address 0x4 - core index']
  #allocation1 [shape = 'u32[144,128]{1,0:T(1,128)}', space=vmem, size = 0x12000, scoped, tag = 'internal scratch']
  %s0 = inlined_call_operand.hbm [shape: f32[8,2,32], index: 0, kind: input, shape index: {}]
  %s1 = inlined_call_operand.hbm [shape: f32[8,1,32], index: 1, kind: input, shape index: {}]
  %s2 = inlined_call_operand.hbm [shape: f32[8,2,32], index: 2, kind: output, shape index: {}]
  %s3 = sld [smem:[#allocation0]]
  $region49: #{tpu_custom_call.1} parent=0
    _
  %s5 = ssub.s32 1, %s3
  %s6 = scalar_select 0, %s5, %s3
  $region1: #{tpu_custom_call.1} parent=0
    #allocation2 [shape = 'u8[4096]{0}', space=vmem, size = 0x1000, scoped, tag = 'input window, operand 0']
    #allocation3 [shape = 's32[2]{0}', space=sflag, size = 0x8, scoped, tag = 'scoped memory for tpu_custom_call.1']
    #allocation4 [shape = 's32[2]{0}', space=sflag, size = 0x8, scoped, tag = 'scoped memory for tpu_custom_call.1']
    #allocation5 [shape = 'u8[2048]{0}', space=vmem, size = 0x800, scoped, tag = 'input window, operand 1']
    #allocation6 [shape = 's32[2]{0}', space=sflag, size = 0x8, scoped, tag = 'scoped memory for tpu_custom_call.1']
    #allocation7 [shape = 'u8[4096]{0}', space=vmem, size = 0x1000, scoped, tag = 'output window, operand 0']
    %7 = vsyncpa [#allocation3], 0
    %s8 = scalar_lea.sflag [#allocation3], 1
    %9 = vsyncpa %s8, 0
    %10 = vsyncpa [#allocation6], 0
    %s11 = scalar_lea.sflag [#allocation6], 1
    %12 = vsyncpa %s11, 0
    %13 = vsyncpa [#allocation4], 0
    %s14 = scalar_lea.sflag [#allocation4], 1
    %15 = vsyncpa %s14, 0
    loop: start=0, step=1, limit=6
    $region2: #{tpu_custom_call.1} parent=1 // loop_pre_header
      _
    $region3: #{tpu_custom_call.1} parent=1 // loop_header
      %s17 = sphi 0, %s21
      %p18 = scmp.ge.s32.totalorder %s17, 6
      %s27 = sphi 0, %s29
      %s30 = sphi 0, %s27
      %s31 = sphi 0, %s30
      %s47 = sphi 0, %s31
      %s53 = sphi 0, %s55
      %s56 = sphi 0, %s53
      %s57 = sphi 0, %s56
      %s73 = sphi 0, %s57
      %s79 = sphi 0, %s81
      %s82 = sphi 0, %s79
      %s83 = sphi 0, %s82
      %s99 = sphi 0, %s83
    $region4: #{tpu_custom_call.1} parent=1 // loop_header_branch
      %20 = sbr.rel (%p18) target = $region8
    $region5: #{tpu_custom_call.1} parent=1 // loop_body
      %s22 = ssub.s32 %s17, 1
      %s23 = ssub.s32 %s17, 2
      %s24 = sadd.s32 %s17, 1
      %s25 = ssub.s32 %s17, %s24
      %p26 = scmp.eq.s32.totalorder %s25, 0
      %s28 = sadd.s32 %s27, 1
      %s29 = scalar_select %p26, %s27, %s28
      %p32 = pneg %p26
      %p33 = scmp.eq.s32.totalorder %s17, 3
      %p34 = por %p32, %p33
      %p35 = scmp.ne.s32.totalorder %s27, %s30
      %p36 = scmp.eq.s32.totalorder %s17, 0
      %p37 = por %p35, %p36
      %p38 = scmp.ne.s32.totalorder %s27, %s30
      %p39 = scmp.eq.s32.totalorder %s22, 3
      %p40 = por %p38, %p39
      %p41 = scmp.ne.s32.totalorder %s30, %s31
      %p42 = scmp.eq.s32.totalorder %s22, 0
      %p43 = por %p41, %p42
      %p44 = scmp.ne.s32.totalorder %s30, %s31
      %p45 = scmp.eq.s32.totalorder %s23, 3
      %p46 = por %p44, %p45
      %p48 = scmp.ne.s32.totalorder %s31, %s47
      %p49 = scmp.eq.s32.totalorder %s23, 0
      %p50 = por %p48, %p49
      %s51 = ssub.s32 %s17, %s24
      %p52 = scmp.eq.s32.totalorder %s51, 0
      %s54 = sadd.s32 %s53, 1
      %s55 = scalar_select %p52, %s53, %s54
      %p58 = pneg %p52
      %p59 = scmp.eq.s32.totalorder %s17, 3
      %p60 = por %p58, %p59
      %p61 = scmp.ne.s32.totalorder %s53, %s56
      %p62 = scmp.eq.s32.totalorder %s17, 0
      %p63 = por %p61, %p62
      %p64 = scmp.ne.s32.totalorder %s53, %s56
      %p65 = scmp.eq.s32.totalorder %s22, 3
      %p66 = por %p64, %p65
      %p67 = scmp.ne.s32.totalorder %s56, %s57
      %p68 = scmp.eq.s32.totalorder %s22, 0
      %p69 = por %p67, %p68
      %p70 = scmp.ne.s32.totalorder %s56, %s57
      %p71 = scmp.eq.s32.totalorder %s23, 3
      %p72 = por %p70, %p71
      %p74 = scmp.ne.s32.totalorder %s57, %s73
      %p75 = scmp.eq.s32.totalorder %s23, 0
      %p76 = por %p74, %p75
      %s77 = ssub.s32 %s17, %s24
      %p78 = scmp.eq.s32.totalorder %s77, 0
      %s80 = sadd.s32 %s79, 1
      %s81 = scalar_select %p78, %s79, %s80
      %p84 = pneg %p78
      %p85 = scmp.eq.s32.totalorder %s17, 3
      %p86 = por %p84, %p85
      %p87 = scmp.ne.s32.totalorder %s79, %s82
      %p88 = scmp.eq.s32.totalorder %s17, 0
      %p89 = por %p87, %p88
      %p90 = scmp.ne.s32.totalorder %s79, %s82
      %p91 = scmp.eq.s32.totalorder %s22, 3
      %p92 = por %p90, %p91
      %p93 = scmp.ne.s32.totalorder %s82, %s83
      %p94 = scmp.eq.s32.totalorder %s22, 0
      %p95 = por %p93, %p94
      %p96 = scmp.ne.s32.totalorder %s82, %s83
      %p97 = scmp.eq.s32.totalorder %s23, 3
      %p98 = por %p96, %p97
      %p100 = scmp.ne.s32.totalorder %s83, %s99
      %p101 = scmp.eq.s32.totalorder %s23, 0
      %p102 = por %p100, %p101
      %p103 = scmp.le.s32.totalorder 1, %s17
      %p104 = scmp.lt.s32.totalorder %s17, 5
      %p105 = pnand %p103, %p104
      %p106 = pneg %p105
      // Predicated region
      $region9: #{tpu_custom_call.1} parent=5 // pred_check
        _
      $region10: #{tpu_custom_call.1} parent=5 // pred_check_branch
        %108 = sbr.rel (%p105) target = $region12
      $region11: #{tpu_custom_call.1} parent=5 // pred_region
        %s109 = ssub.s32 %s17, 1
      $region12: #{tpu_custom_call.1} parent=5 // pred_fallthru
        _
      %p110 = scmp.lt.s32.totalorder %s17, 4
      // Predicated region
      $region13: #{tpu_custom_call.1} parent=5 // pred_check
        %p111 = pneg %p110
      $region14: #{tpu_custom_call.1} parent=5 // pred_check_branch
        %113 = sbr.rel (%p111) target = $region16
      $region15: #{tpu_custom_call.1} parent=5 // pred_region
        // Predicated region
        $region17: #{tpu_custom_call.1} parent=15 // pred_check
          %p114 = pneg %p37
        $region18: #{tpu_custom_call.1} parent=15 // pred_check_branch
          %116 = sbr.rel (%p114) target = $region20
        $region19: #{tpu_custom_call.1} parent=15 // pred_region
          %s117 = sand.u32 %s27, 1
          %s118 = scalar_lea.sflag [#allocation3], %s117
          %s119 = sand.u32 %s27, 1
          %s120 = smul.addr %s119, 4
          %s121 = scalar_lea.vmem [#allocation2], %s120
          %s122 = smul.u32 2, %s17
          %s124 = ssub.s32 64, 64
          %125 = vsyncadd %s118, %s124
          %s126 = smul.addr %s122, 32
          %s127 = scalar_lea.hbm %s0, %s126
          %s128 = sshll.u32 %s121, 4
          %s129 = int_to_ptr.vmem [resolvable:$true] %s128
          %134 = dma.hbm_to_vmem [thread:$0]  %s127, 64, %s129, %s118, 32, 32, 2
        $region20: #{tpu_custom_call.1} parent=15 // pred_fallthru
          _
        // Predicated region
        $region21: #{tpu_custom_call.1} parent=15 // pred_check
          %p135 = pneg %p63
        $region22: #{tpu_custom_call.1} parent=15 // pred_check_branch
          %137 = sbr.rel (%p135) target = $region24
        $region23: #{tpu_custom_call.1} parent=15 // pred_region
          %s138 = sand.u32 %s53, 1
          %s139 = scalar_lea.sflag [#allocation6], %s138
          %s140 = sand.u32 %s53, 1
          %s141 = smul.addr %s140, 2
          %s142 = scalar_lea.vmem [#allocation5], %s141
          %s143 = smul.u32 2, %s17
          %s145 = ssub.s32 32, 32
          %146 = vsyncadd %s139, %s145
          %s147 = smul.addr %s143, 16
          %s148 = scalar_lea.hbm %s1, %s147
          %s149 = sshll.u32 %s142, 4
          %s150 = int_to_ptr.vmem [resolvable:$true] %s149
          %155 = dma.hbm_to_vmem [thread:$0]  %s148, 32, %s150, %s139, 16, 16, 1
        $region24: #{tpu_custom_call.1} parent=15 // pred_fallthru
          _
      $region16: #{tpu_custom_call.1} parent=5 // pred_fallthru
        _
      %p156 = scmp.le.s32.totalorder 1, %s17
      %p157 = scmp.lt.s32.totalorder %s17, 5
      %p158 = pnand %p156, %p157
      %p159 = pneg %p158
      // Predicated region
      $region25: #{tpu_custom_call.1} parent=5 // pred_check
        _
      $region26: #{tpu_custom_call.1} parent=5 // pred_check_branch
        %161 = sbr.rel (%p158) target = $region28
      $region27: #{tpu_custom_call.1} parent=5 // pred_region
        %s162 = ssub.s32 %s17, 1
        %s163 = sand.u32 %s30, 1
        %s164 = scalar_lea.sflag [#allocation3], %s163
        %s165 = sand.u32 %s30, 1
        %s166 = smul.addr %s165, 4
        %s167 = scalar_lea.vmem [#allocation2], %s166
        // Predicated region
        $region29: #{tpu_custom_call.1} parent=27 // pred_check
          %p168 = pneg %p43
        $region30: #{tpu_custom_call.1} parent=27 // pred_check_branch
          %170 = sbr.rel (%p168) target = $region32
        $region31: #{tpu_custom_call.1} parent=27 // pred_region
          %171 = dma.done %s164, 64
        $region32: #{tpu_custom_call.1} parent=27 // pred_fallthru
          _
        %s172 = sand.u32 %s56, 1
        %s173 = scalar_lea.sflag [#allocation6], %s172
        %s174 = sand.u32 %s56, 1
        %s175 = smul.addr %s174, 2
        %s176 = scalar_lea.vmem [#allocation5], %s175
        // Predicated region
        $region33: #{tpu_custom_call.1} parent=27 // pred_check
          %p177 = pneg %p69
        $region34: #{tpu_custom_call.1} parent=27 // pred_check_branch
          %179 = sbr.rel (%p177) target = $region36
        $region35: #{tpu_custom_call.1} parent=27 // pred_region
          %180 = dma.done %s173, 32
        $region36: #{tpu_custom_call.1} parent=27 // pred_fallthru
          _
        %s181 = sand.u32 %s30, 1
        %s182 = scalar_lea.sflag [#allocation3], %s181
        %s183 = sand.u32 %s30, 1
        %s184 = smul.addr %s183, 4
        %s185 = scalar_lea.vmem [#allocation2], %s184
        %p186 = pneg %p43
        %p187 = pneg %p40
        %s188 = sand.u32 %s56, 1
        %s189 = scalar_lea.sflag [#allocation6], %s188
        %s190 = sand.u32 %s56, 1
        %s191 = smul.addr %s190, 2
        %s192 = scalar_lea.vmem [#allocation5], %s191
        %p193 = pneg %p69
        %p194 = pneg %p66
        %p195 = pneg %p95
        %p196 = pneg %p92
        %s197 = sand.u32 %s82, 1
        %s198 = scalar_lea.sflag [#allocation4], %s197
        %s199 = sand.u32 %s82, 1
        %s200 = smul.addr %s199, 4
        %s201 = scalar_lea.vmem [#allocation7], %s200
        %s202 = smul.u32 2, %s22
        %s203 = smul.u32 2, %s22
        %s204 = smul.u32 2, %s22
        %v205 = vld [vmem:[%s167] sm:$0x3]
        %v206 = vld [vmem:[%s167 + $0x2] sm:$0x3]
        %v207 = vld [vmem:[%s176] sm:$0x1]
        %v208 = vld [vmem:[%s176 + $0x1] sm:$0x1]
        %v211 = vlaneseq
        %v212 = vshrl.u32 %v211, 7
        %v213 = vsub.s32 0, %v212
        %v214 = vrot.slane %v207, %v213
        %v215 = vlaneseq
        %v216 = vshrl.u32 %v215, 7
        %v217 = vsub.s32 0, %v216
        %v218 = vrot.slane %v208, %v217
        %v221 = vadd.f32 %v205, %v214
        %v222 = vadd.f32 %v206, %v218
        %vm223 = vcmask 254976
        %224 = vst.msk [vmem:[%s201] sm:$0x3] %vm223, %v221
        %225 = vst.msk [vmem:[%s201 + $0x2] sm:$0x3] %vm223, %v222
        %s226 = sand.u32 %s82, 1
        %s227 = scalar_lea.sflag [#allocation4], %s226
        %s228 = sand.u32 %s82, 1
        %s229 = smul.addr %s228, 4
        %s230 = scalar_lea.vmem [#allocation7], %s229
        // Predicated region
        $region37: #{tpu_custom_call.1} parent=27 // pred_check
          %p231 = pneg %p92
        $region38: #{tpu_custom_call.1} parent=27 // pred_check_branch
          %233 = sbr.rel (%p231) target = $region40
        $region39: #{tpu_custom_call.1} parent=27 // pred_region
          %s234 = smul.u32 2, %s22
          %s236 = ssub.s32 64, 64
          %237 = vsyncadd %s227, %s236
          %s238 = smul.addr %s234, 32
          %s239 = scalar_lea.hbm %s2, %s238
          %s240 = sshll.u32 %s230, 4
          %s241 = int_to_ptr.vmem [resolvable:$true] %s240
          %246 = dma.vmem_to_hbm [thread:$0]  %s241, 64, %s239, %s227, 32, 32, 2
        $region40: #{tpu_custom_call.1} parent=27 // pred_fallthru
          _
      $region28: #{tpu_custom_call.1} parent=5 // pred_fallthru
        _
      %p247 = scmp.le.s32.totalorder 2, %s17
      // Predicated region
      $region41: #{tpu_custom_call.1} parent=5 // pred_check
        %p248 = pneg %p247
      $region42: #{tpu_custom_call.1} parent=5 // pred_check_branch
        %250 = sbr.rel (%p248) target = $region44
      $region43: #{tpu_custom_call.1} parent=5 // pred_region
        %s251 = ssub.s32 %s17, 2
        // Predicated region
        $region45: #{tpu_custom_call.1} parent=43 // pred_check
          %p252 = pneg %p98
        $region46: #{tpu_custom_call.1} parent=43 // pred_check_branch
          %254 = sbr.rel (%p252) target = $region48
        $region47: #{tpu_custom_call.1} parent=43 // pred_region
          %s255 = sand.u32 %s83, 1
          %s256 = scalar_lea.sflag [#allocation4], %s255
          %s257 = sand.u32 %s83, 1
          %s258 = smul.addr %s257, 4
          %s259 = scalar_lea.vmem [#allocation7], %s258
          %260 = dma.done %s256, 64
        $region48: #{tpu_custom_call.1} parent=43 // pred_fallthru
          _
      $region44: #{tpu_custom_call.1} parent=5 // pred_fallthru
        _
    $region6: #{tpu_custom_call.1} parent=1 // loop_footer
      %s21 = sadd.s32 1, %s17
    $region7: #{tpu_custom_call.1} parent=1 // loop_footer_branch
      %16 = sbr.rel target = $region3
    $region8: #{tpu_custom_call.1} parent=1 // loop_exit
      _
    %261 = vsyncpa [#allocation3], 1
    %s262 = scalar_lea.sflag [#allocation3], 1
    %263 = vsyncpa %s262, 1
    %264 = vsyncpa [#allocation6], 1
    %s265 = scalar_lea.sflag [#allocation6], 1
    %266 = vsyncpa %s265, 1
    %267 = vsyncpa [#allocation4], 1
    %s268 = scalar_lea.sflag [#allocation4], 1
    %269 = vsyncpa %s268, 1

</llo_original>
